<compile_context>
chip_gen: v5e
topology: v5e:2x2
jax: 0.10.0
libtpu: 0.0.40
codegen_flags: <defaults>
</compile_context>

<pallas_src>
import functools

import jax
import jax.numpy as jnp
from jax.experimental import pallas as pl
from jax.experimental.pallas import tpu as pltpu


def _round_up(x: int, m: int) -> int:
    return ((x + m - 1) // m) * m


def _vmem_limit_bytes() -> int:
    """Per-generation VMEM limit with ~20% headroom for compiler scratch."""
    try:
        cap = int(pltpu.get_tpu_info().vmem_capacity_bytes)
    except Exception:
        cap = 64 * 1024 * 1024          # conservative (v7x-sized) fallback
    return max(32 * 1024 * 1024, int(cap * 0.8))


def _choose_tile_n(n: int, c: int, in_itemsize: int, vmem_limit: int) -> int:
    """Row-tile size: target ~4 MiB logits blocks, bounded by a VMEM budget
    that includes the f32 in-kernel temporaries, and by N itself."""
    # Per-row bytes: double-buffered input block + ~5 f32 full-width temps
    # (x cast, shifted, exp(shifted), one-hot compare, select result).
    per_row = 2 * c * in_itemsize + 5 * c * 4
    budget = int(vmem_limit * 0.7)                     # leave room for outputs etc.
    rows_fit = max(8, (budget // per_row) // 8 * 8)

    # Big enough blocks to amortize the ~0.35us/step grid overhead.
    target_block_bytes = 4 * 1024 * 1024
    rows_target = max(8, (target_block_bytes // max(1, c * in_itemsize)) // 8 * 8)

    tile_n = min(rows_fit, rows_target, _round_up(n, 8))
    return max(8, (tile_n // 8) * 8)


def _label_smoothing_ce_kernel(x_ref, t_ref, part_ref, *, n_total: int,
                               tile_n: int):
    i = pl.program_id(0)

    x = x_ref[...].astype(jnp.float32)       # (tile_n, C): cast AFTER the DMA
    t = t_ref[...]                           # (tile_n, 1) int32 targets
    tn, c = x.shape

    # Numerically stable log_softmax pieces without materializing log_preds:
    #   log_preds = shifted - lse,  shifted = x - max(x)
    m = jnp.max(x, axis=-1, keepdims=True)                            # (tn, 1)
    shifted = x - m
    lse = jnp.log(jnp.sum(jnp.exp(shifted), axis=-1, keepdims=True))  # (tn, 1)

    # sum_c log_preds[i, :] = sum_c shifted[i, :] - C * lse[i]
    row_sum = jnp.sum(shifted, axis=-1, keepdims=True) - float(c) * lse

    # log_preds[i, target[i]] = shifted[i, target[i]] - lse[i]
    # (1, C) iota broadcasts against the (tile_n, 1) targets -> no full-tile
    # int32 iota temporary.
    cls_idx = jax.lax.broadcasted_iota(jnp.int32, (1, c), 1)
    picked = jnp.sum(jnp.where(cls_idx == t, shifted, 0.0),
                     axis=-1, keepdims=True) - lse

    # Mask rows that are padding of the last partial block (garbage only ever
    # flows through per-row lanes that jnp.where then discards).
    row_idx = i * tile_n + jax.lax.broadcasted_iota(jnp.int32, (tn, 1), 0)
    valid = row_idx < n_total
    row_sum = jnp.where(valid, row_sum, 0.0)
    picked = jnp.where(valid, picked, 0.0)

    s_all = jnp.sum(row_sum)     # partial: sum_i sum_c log_preds[i, c]
    s_pick = jnp.sum(picked)     # partial: sum_i log_preds[i, target[i]]

    # Per-program partial output block (no cross-step dependency -> the grid
    # axis is safely "parallel"): lane 0 <- s_all, lane 1 <- s_pick.
    lane = jax.lax.broadcasted_iota(jnp.int32, part_ref.shape, 2)
    part_ref[...] = jnp.where(lane == 0, s_all, s_pick)


def label_smoothing_cross_entropy(output, target, epsilon: float = 0.1,
                                  tile_n: int | None = None):
    """Matches LabelSmoothingCrossEntropy(epsilon, reduction='mean').forward."""
    n, c = output.shape
    t2 = target.reshape(n, 1).astype(jnp.int32)

    itemsize = jnp.dtype(output.dtype).itemsize
    vmem_limit = _vmem_limit_bytes()
    if tile_n is None:
        tile_n = _choose_tile_n(n, c, itemsize, vmem_limit)
    else:
        tile_n = max(8, (min(tile_n, _round_up(n, 8)) // 8) * 8)
    grid_n = pl.cdiv(n, tile_n)

    kernel = functools.partial(_label_smoothing_ce_kernel,
                               n_total=n, tile_n=tile_n)

    parts = pl.pallas_call(
        kernel,
        out_shape=jax.ShapeDtypeStruct((grid_n, 8, 2), jnp.float32),
        grid=(grid_n,),
        in_specs=[
            pl.BlockSpec((tile_n, c), lambda i: (i, 0)),     # logits tile
            pl.BlockSpec((tile_n, 1), lambda i: (i, 0)),     # target tile
        ],
        out_specs=pl.BlockSpec((1, 8, 2), lambda i: (i, 0, 0)),
        compiler_params=pltpu.CompilerParams(
            dimension_semantics=("parallel",),               # megacore-friendly
            vmem_limit_bytes=vmem_limit,
        ),
    )(output, t2)

    # Final tiny reduction + epsilon blend in the wrapper (f32).
    s_all = jnp.sum(parts[:, 0, 0])
    s_pick = jnp.sum(parts[:, 0, 1])
    inv_n = 1.0 / float(n)
    loss = -s_all * inv_n            # mean_i( -sum_c log_preds[i, c] )
    nll = -s_pick * inv_n            # mean_i( -log_preds[i, target[i]] )
    # lin_comb(loss / C, nll, eps) = eps * loss/C + (1 - eps) * nll
    return epsilon * (loss / float(c)) + (1.0 - epsilon) * nll


def _reference(output, target, epsilon: float = 0.1):
    x = output.astype(jnp.float32)
    c = x.shape[-1]
    log_preds = jax.nn.log_softmax(x, axis=-1)
    loss = jnp.mean(-jnp.sum(log_preds, axis=-1))
    nll = jnp.mean(-jnp.take_along_axis(log_preds, target[:, None], axis=-1))
    return epsilon * (loss / c) + (1.0 - epsilon) * nll


if __name__ == "__main__":
    key = jax.random.PRNGKey(0)
    k1, k2, k3, k4, k5, k6 = jax.random.split(key, 6)

    # Case 1: small f32 (typical (batch, classes) input), single block.
    N1, C1 = 8, 32
    logits1 = jax.random.normal(k1, (N1, C1), dtype=jnp.float32)
    target1 = jax.random.randint(k2, (N1,), 0, C1, dtype=jnp.int32)
    res1 = jax.block_until_ready(
        label_smoothing_cross_entropy(logits1, target1, epsilon=0.1))
    ref1 = _reference(logits1, target1, epsilon=0.1)
    assert jnp.allclose(res1, ref1, rtol=1e-5, atol=1e-5), (res1, ref1)

    # Case 2: bf16 logits (in-kernel cast) with N not a multiple of 8
    # (exercises the padding-row mask).
    N2, C2 = 20, 64
    logits2 = jax.random.normal(k3, (N2, C2), dtype=jnp.bfloat16)
    target2 = jax.random.randint(k4, (N2,), 0, C2, dtype=jnp.int32)
    res2 = jax.block_until_ready(
        label_smoothing_cross_entropy(logits2, target2, epsilon=0.1))
    ref2 = _reference(logits2, target2, epsilon=0.1)
    assert jnp.allclose(res2, ref2, rtol=1e-4, atol=1e-4), (res2, ref2)

    # Case 3: forced small tile -> multi-program grid, exercises the parallel
    # per-program partial path and the wrapper-side reduction.
    N3, C3 = 48, 128
    logits3 = jax.random.normal(k5, (N3, C3), dtype=jnp.float32)
    target3 = jax.random.randint(k6, (N3,), 0, C3, dtype=jnp.int32)
    res3 = jax.block_until_ready(
        label_smoothing_cross_entropy(logits3, target3, epsilon=0.1, tile_n=16))
    ref3 = _reference(logits3, target3, epsilon=0.1)
    assert jnp.allclose(res3, ref3, rtol=1e-5, atol=1e-5), (res3, ref3)

    print("KERNEL_OK")
</pallas_src>

<mosaic_0001>
module attributes {stable_mosaic.version = 11 : i64} {
  func.func @_label_smoothing_ce_kernel(%arg0: i32, %arg1: memref<8x32xf32, #tpu.memory_space<vmem>>, %arg2: memref<8x1xi32, #tpu.memory_space<vmem>>, %arg3: memref<1x8x2xf32, #tpu.memory_space<vmem>>) attributes {dimension_semantics = [#tpu.dimension_semantics<parallel>], iteration_bounds = array<i64: 1>, scalar_prefetch = 0 : i64, scratch_operands = 0 : i64, tpu.core_type = #tpu.core_type<tc>, window_params = [{transform_indices = @transform_0, window_bounds = array<i64: 8, 32>}, {transform_indices = @transform_1, window_bounds = array<i64: 8, 1>}, {transform_indices = @transform_2, window_bounds = array<i64: 1, 8, 2>}]} {
    %c0 = arith.constant 0 : index
    %c0_0 = arith.constant 0 : index
    %0 = vector.load %arg1[%c0, %c0_0] : memref<8x32xf32, #tpu.memory_space<vmem>>, vector<8x32xf32>
    %c0_1 = arith.constant 0 : index
    %c0_2 = arith.constant 0 : index
    %1 = vector.load %arg2[%c0_1, %c0_2] : memref<8x1xi32, #tpu.memory_space<vmem>>, vector<8x1xi32>
    %cst = arith.constant dense<0xFF800000> : vector<8xf32>
    %2 = vector.multi_reduction <maximumf>, %0, %cst [1] : vector<8x32xf32> to vector<8xf32>
    %3 = vector.shape_cast %2 : vector<8xf32> to vector<8x1xf32>
    %4 = vector.broadcast %3 : vector<8x1xf32> to vector<8x32xf32>
    %5 = arith.subf %0, %4 : vector<8x32xf32>
    %6 = math.exp %5 : vector<8x32xf32>
    %cst_3 = arith.constant dense<0.000000e+00> : vector<8xf32>
    %7 = vector.multi_reduction <add>, %6, %cst_3 [1] : vector<8x32xf32> to vector<8xf32>
    %8 = vector.shape_cast %7 : vector<8xf32> to vector<8x1xf32>
    %9 = math.log %8 : vector<8x1xf32>
    %cst_4 = arith.constant dense<0.000000e+00> : vector<8xf32>
    %10 = vector.multi_reduction <add>, %5, %cst_4 [1] : vector<8x32xf32> to vector<8xf32>
    %11 = vector.shape_cast %10 : vector<8xf32> to vector<8x1xf32>
    %cst_5 = arith.constant 3.200000e+01 : f32
    %12 = vector.broadcast %cst_5 : f32 to vector<8x1xf32>
    %13 = arith.mulf %12, %9 : vector<8x1xf32>
    %14 = arith.subf %11, %13 : vector<8x1xf32>
    %15 = tpu.iota {dimensions = array<i32: 1>} : vector<1x32xi32>
    %16 = vector.broadcast %15 : vector<1x32xi32> to vector<8x32xi32>
    %17 = vector.broadcast %1 : vector<8x1xi32> to vector<8x32xi32>
    %18 = arith.cmpi eq, %16, %17 : vector<8x32xi32>
    %cst_6 = arith.constant 0.000000e+00 : f32
    %19 = vector.broadcast %cst_6 : f32 to vector<8x32xf32>
    %20 = arith.select %18, %5, %19 : vector<8x32xi1>, vector<8x32xf32>
    %cst_7 = arith.constant dense<0.000000e+00> : vector<8xf32>
    %21 = vector.multi_reduction <add>, %20, %cst_7 [1] : vector<8x32xf32> to vector<8xf32>
    %22 = vector.shape_cast %21 : vector<8xf32> to vector<8x1xf32>
    %23 = arith.subf %22, %9 : vector<8x1xf32>
    %c8_i32 = arith.constant 8 : i32
    %24 = arith.muli %arg0, %c8_i32 : i32
    %25 = tpu.iota {dimensions = array<i32: 0>} : vector<8x1xi32>
    %26 = vector.broadcast %24 : i32 to vector<8x1xi32>
    %27 = arith.addi %26, %25 : vector<8x1xi32>
    %c8_i32_8 = arith.constant 8 : i32
    %28 = vector.broadcast %c8_i32_8 : i32 to vector<8x1xi32>
    %29 = arith.cmpi slt, %27, %28 : vector<8x1xi32>
    %cst_9 = arith.constant 0.000000e+00 : f32
    %30 = vector.broadcast %cst_9 : f32 to vector<8x1xf32>
    %31 = arith.select %29, %14, %30 : vector<8x1xi1>, vector<8x1xf32>
    %cst_10 = arith.constant 0.000000e+00 : f32
    %32 = vector.broadcast %cst_10 : f32 to vector<8x1xf32>
    %33 = arith.select %29, %23, %32 : vector<8x1xi1>, vector<8x1xf32>
    %34 = vector.shape_cast %31 : vector<8x1xf32> to vector<1x8x1xf32>
    %cst_11 = arith.constant dense<0.000000e+00> : vector<1xf32>
    %35 = vector.multi_reduction <add>, %34, %cst_11 [1, 2] : vector<1x8x1xf32> to vector<1xf32>
    %36 = vector.shape_cast %35 : vector<1xf32> to vector<1x1x1xf32>
    %37 = vector.extract %36[0, 0, 0] : f32 from vector<1x1x1xf32>
    %38 = vector.shape_cast %33 : vector<8x1xf32> to vector<1x8x1xf32>
    %cst_12 = arith.constant dense<0.000000e+00> : vector<1xf32>
    %39 = vector.multi_reduction <add>, %38, %cst_12 [1, 2] : vector<1x8x1xf32> to vector<1xf32>
    %40 = vector.shape_cast %39 : vector<1xf32> to vector<1x1x1xf32>
    %41 = vector.extract %40[0, 0, 0] : f32 from vector<1x1x1xf32>
    %42 = tpu.iota {dimensions = array<i32: 2>} : vector<1x8x2xi32>
    %c0_i32 = arith.constant 0 : i32
    %43 = vector.broadcast %c0_i32 : i32 to vector<1x8x2xi32>
    %44 = arith.cmpi eq, %42, %43 : vector<1x8x2xi32>
    %45 = vector.broadcast %37 : f32 to vector<1x8x2xf32>
    %46 = vector.broadcast %41 : f32 to vector<1x8x2xf32>
    %47 = arith.select %44, %45, %46 : vector<1x8x2xi1>, vector<1x8x2xf32>
    %c0_13 = arith.constant 0 : index
    %c0_14 = arith.constant 0 : index
    %c0_15 = arith.constant 0 : index
    %48 = vector.load %arg3[%c0_13, %c0_14, %c0_15] : memref<1x8x2xf32, #tpu.memory_space<vmem>>, vector<1x8x2xf32>
    tpu.vector_store %arg3[%c0_13, %c0_14, %c0_15], %47 {strides = array<i32>} : memref<1x8x2xf32, #tpu.memory_space<vmem>>, vector<1x8x2xf32>,
    return
  }
  func.func @transform_0(%arg0: i32) -> (i32, i32) {
    %c0_i32 = arith.constant 0 : i32
    %c0_i32_0 = arith.constant 0 : i32
    return %arg0, %c0_i32 : i32, i32
  }
  func.func @transform_1(%arg0: i32) -> (i32, i32) {
    %c0_i32 = arith.constant 0 : i32
    %c0_i32_0 = arith.constant 0 : i32
    return %arg0, %c0_i32 : i32, i32
  }
  func.func @transform_2(%arg0: i32) -> (i32, i32, i32) {
    %c0_i32 = arith.constant 0 : i32
    %c0_i32_0 = arith.constant 0 : i32
    %c0_i32_1 = arith.constant 0 : i32
    return %arg0, %c0_i32, %c0_i32_0 : i32, i32, i32
  }
}

</mosaic_0001>

<llo_original>
// kernel: tpu_custom_call.1
$region0: #{tpu_custom_call.1}
  #allocation0 [shape = 'u32[]', space=smem, size = 0x4, offset = 0x4, fixed_abs, tag = 'smem constant byte address 0x4 - core index']
  #allocation1 [shape = 'u32[72,128]{1,0:T(1,128)}', space=vmem, size = 0x9000, scoped, tag = 'internal scratch']
  %s0 = inlined_call_operand.vmem [shape: f32[8,32], index: 0, kind: input, shape index: {}]
  %s1 = inlined_call_operand.vmem [shape: s32[8,1], index: 1, kind: input, shape index: {}]
  %s2 = inlined_call_operand.vmem [shape: f32[1,8,2], index: 2, kind: output, shape index: {}]
  %s3 = sld [smem:[#allocation0]]
  $region18: #{tpu_custom_call.1} parent=0
    _
  %s5 = ssub.s32 1, %s3
  %s6 = scalar_select 0, %s5, %s3
  // Predicated region
  $region2: #{tpu_custom_call.1} parent=0 // pred_check
    _
  $region3: #{tpu_custom_call.1} parent=0 // pred_check_branch
    %8 = sbr.rel (0) target = $region5
  $region4: #{tpu_custom_call.1} parent=0 // pred_region
    _
  $region5: #{tpu_custom_call.1} parent=0 // pred_fallthru
    _
  // Predicated region
  $region6: #{tpu_custom_call.1} parent=0 // pred_check
    _
  $region7: #{tpu_custom_call.1} parent=0 // pred_check_branch
    %10 = sbr.rel (0) target = $region9
  $region8: #{tpu_custom_call.1} parent=0 // pred_region
    _
  $region9: #{tpu_custom_call.1} parent=0 // pred_fallthru
    _
  %v11 = vld [vmem:[%s0] sm:$0xff]
  %v12 = vld [vmem:[%s1] sm:$0xff]
  %vm13 = vcmask 261120
  %v14 = vsel %vm13, %v11, -inf
  %15 = vmax.xlane.f32.xlu0 %v14
  %v16 = vpop.xlane.xlu0 %15
  %v17 = vsub.f32 %v11, %v16
  %v18 = vmul.f32 %v17, 1.442695
  %v19 = vpow.pop %v18
  %v20 = vsel %vm13, %v19, 0.0
  %21 = vadd.xlane.f32.xlu0 %v20
  %v22 = vpop.xlane.xlu0 %21
  %v23 = vlog2.pop %v22
  %v24 = vmul.f32 %v23, 0.6931472
  %v25 = vsel %vm13, %v17, 0.0
  %26 = vadd.xlane.f32.xlu0 %v25
  %v27 = vpop.xlane.xlu0 %26
  %v28 = vmul.f32 %v24, 32.0
  %v29 = vsub.f32 %v27, %v28
  %v30 = vlaneseq
  %v31 = vand.u32 %v30, 127
  %32 = vset.pattern.permute.xlu0 0
  %33 = vperm.xlu0 %32, %v12
  %v34 = vpop.permute.xlu0 %33
  %vm35 = vcmp.eq.s32.totalorder %v31, %v34
  %v36 = vsel %vm35, %v17, 0.0
  %v37 = vsel %vm13, %v36, 0.0
  %38 = vadd.xlane.f32.xlu0 %v37
  %v39 = vpop.xlane.xlu0 %38
  %v40 = vsub.f32 %v39, %v24
  %s41 = smul.u32 0, 8
  %v42 = vlaneseq
  %v43 = vshrl.u32 %v42, 7
  %v44 = vstv %s41
  %v45 = vadd.s32 %v44, %v43
  %vm46 = vcmp.lt.s32.totalorder %v45, 8
  %v47 = vsel %vm46, %v29, 0.0
  %v48 = vsel %vm46, %v40, 0.0
  %vm49 = vcmask 7168
  %v50 = vsel %vm49, %v47, 0.0
  %51 = vadd.xlane.f32.xlu0 %v50
  %v52 = vpop.xlane.xlu0 %51
  %v53 = vrot.slane %v52, 4
  %v54 = vadd.f32 %v52, %v53
  %v55 = vrot.slane %v54, 2
  %v56 = vadd.f32 %v54, %v55
  %v57 = vrot.slane %v56, 1
  %v58 = vadd.f32 %v56, %v57
  %s59 = vtos %v58
  %v60 = vsel %vm49, %v48, 0.0
  %61 = vadd.xlane.f32.xlu0 %v60
  %v62 = vpop.xlane.xlu0 %61
  %v63 = vrot.slane %v62, 4
  %v64 = vadd.f32 %v62, %v63
  %v65 = vrot.slane %v64, 2
  %v66 = vadd.f32 %v64, %v65
  %v67 = vrot.slane %v66, 1
  %v68 = vadd.f32 %v66, %v67
  %s69 = vtos %v68
  %vm70 = vcmp.eq.s32.totalorder %v31, 0
  %v71 = vstv %s59
  %v72 = vstv %s69
  %v73 = vsel %vm70, %v71, %v72
  %vm74 = vcmask 15360
  %75 = vst.msk [vmem:[%s2] sm:$0xff] %vm74, %v73
  // Predicated region
  $region10: #{tpu_custom_call.1} parent=0 // pred_check
    _
  $region11: #{tpu_custom_call.1} parent=0 // pred_check_branch
    %77 = sbr.rel (0) target = $region13
  $region12: #{tpu_custom_call.1} parent=0 // pred_region
    _
  $region13: #{tpu_custom_call.1} parent=0 // pred_fallthru
    _
  // Predicated region
  $region14: #{tpu_custom_call.1} parent=0 // pred_check
    _
  $region15: #{tpu_custom_call.1} parent=0 // pred_check_branch
    %79 = sbr.rel (0) target = $region17
  $region16: #{tpu_custom_call.1} parent=0 // pred_region
    _
  $region17: #{tpu_custom_call.1} parent=0 // pred_fallthru
    _

</llo_original>
